<compile_context>
chip_gen: v7x
topology: tpu7x:2x2x1
jax: 0.10.0
libtpu: 0.0.40
codegen_flags: <defaults>
</compile_context>

<pallas_src>
import jax
import jax.numpy as jnp
from jax.experimental import pallas as pl
from jax.experimental.pallas import tpu as pltpu

# TODO(synk): real input_dim comes from joblib-loaded vectorizer.pkl; fixed constant here.
INPUT_DIM = 256
HIDDEN = 128
OUT = 2
OUT_PAD = 128            # fc2 MXU tile width inside the kernel (never written to HBM)
DEFAULT_TILE_B = 8192    # 8 MiB f32 x-tile; double-buffered it fits the 32 MiB VMEM limit


def _round_up(v, m):
    return -(-v // m) * m


def mlp_kernel(x_ref, w1_ref, b1_ref, w2_ref, b2_ref, o_ref):
    # Cast x f32 -> bf16 on the VPU (free under the DMA); fc1 on the MXU, f32 acc.
    x = x_ref[...].astype(jnp.bfloat16)
    h = jnp.dot(x, w1_ref[...], preferred_element_type=jnp.float32)
    # Bias + ReLU in f32 (safe on v5e: no bf16 VPU there).
    h = jnp.maximum(h + b1_ref[...], 0.0)
    # fc2 against the 128-wide zero-padded bf16 W2 -> full MXU tile, f32 acc.
    y = jnp.dot(h.astype(jnp.bfloat16), w2_ref[...],
                preferred_element_type=jnp.float32) + b2_ref[...]
    # Only the 2 real logit columns leave the kernel (narrow masked store is
    # vreg/VMEM-only cost and hidden under the DMA).
    o_ref[...] = y[:, :OUT].astype(o_ref.dtype)


def ann_forward(x, w1, b1, w2, b2, *, tile_b=DEFAULT_TILE_B):
    B, D = x.shape
    assert w1.shape == (D, HIDDEN) and b1.shape == (1, HIDDEN)
    assert w2.shape == (HIDDEN, OUT) and b2.shape == (1, OUT)

    # Small weights: cast in the wrapper (64 KiB / 32 KiB, negligible HBM cost).
    w1_bf = w1.astype(jnp.bfloat16)
    w2p = jnp.zeros((HIDDEN, OUT_PAD), jnp.bfloat16).at[:, :OUT].set(
        w2.astype(jnp.bfloat16))
    b2p = jnp.zeros((1, OUT_PAD), jnp.float32).at[:, :OUT].set(b2)

    # --- batch tile selection (multiple of 8 for f32 sublane packing) ---
    tb = tile_b
    if B > 32:
        # Ensure >= 2 grid tiles so v7x's two TensorCores both participate.
        half = -(-B // 2)
        align = 512 if half >= 512 else 8
        tb = min(tb, _round_up(half, align))
    tb = min(tb, _round_up(B, 8))
    tb = max(8, (tb // 8) * 8)
    n_tiles = pl.cdiv(B, tb)   # ragged final block handled by Pallas (no jnp.pad)

    flops = 2 * B * D * HIDDEN + 2 * B * HIDDEN * OUT_PAD
    bytes_accessed = (
        B * D * 4                 # x (f32, read once)
        + D * HIDDEN * 2          # W1 (bf16)
        + HIDDEN * 4              # b1 (f32)
        + HIDDEN * OUT_PAD * 2    # W2 padded (bf16)
        + OUT_PAD * 4             # b2 padded (f32)
        + B * OUT * 4             # output (f32, narrow)
    )

    out = pl.pallas_call(
        mlp_kernel,
        out_shape=jax.ShapeDtypeStruct((B, OUT), jnp.float32),
        grid=(n_tiles,),
        in_specs=[
            pl.BlockSpec((tb, D), lambda i: (i, 0)),            # streamed x tile (f32)
            pl.BlockSpec((D, HIDDEN), lambda i: (0, 0)),        # W1, VMEM-resident
            pl.BlockSpec((1, HIDDEN), lambda i: (0, 0)),        # b1
            pl.BlockSpec((HIDDEN, OUT_PAD), lambda i: (0, 0)),  # W2 (padded, bf16)
            pl.BlockSpec((1, OUT_PAD), lambda i: (0, 0)),       # b2 (padded)
        ],
        out_specs=pl.BlockSpec((tb, OUT), lambda i: (i, 0)),    # narrow logits
        compiler_params=pltpu.CompilerParams(
            dimension_semantics=("parallel",),      # batch tiles across v7x's 2 TCs
            vmem_limit_bytes=32 * 1024 * 1024,      # headroom for 2 x 8 MiB x-buffers
        ),
        cost_estimate=pl.CostEstimate(
            flops=flops, transcendentals=0, bytes_accessed=bytes_accessed
        ),
    )(x, w1_bf, b1, w2p, b2p)

    return out


def init_params(key, input_dim):
    # Deterministic synthetic init (PyTorch-Linear-style uniform bounds).
    k1, k2, k3, k4 = jax.random.split(key, 4)
    bound1 = 1.0 / jnp.sqrt(input_dim)
    bound2 = 1.0 / jnp.sqrt(HIDDEN)
    w1 = jax.random.uniform(k1, (input_dim, HIDDEN), jnp.float32, -bound1, bound1)
    b1 = jax.random.uniform(k2, (1, HIDDEN), jnp.float32, -bound1, bound1)
    w2 = jax.random.uniform(k3, (HIDDEN, OUT), jnp.float32, -bound2, bound2)
    b2 = jax.random.uniform(k4, (1, OUT), jnp.float32, -bound2, bound2)
    return w1, b1, w2, b2


if __name__ == "__main__":
    key = jax.random.PRNGKey(0)
    kx, kp = jax.random.split(key)

    batch = 8
    x = jax.random.normal(kx, (batch, INPUT_DIM), jnp.float32)
    w1, b1, w2, b2 = init_params(kp, INPUT_DIM)

    out = jax.block_until_ready(ann_forward(x, w1, b1, w2, b2))

    # Reference in plain JAX (f32). bf16 matmul operands -> relaxed tolerance.
    ref = jnp.maximum(x @ w1 + b1, 0.0) @ w2 + b2
    assert out.shape == (batch, OUT)
    assert jnp.allclose(out, ref, atol=2e-2, rtol=2e-2)

    print("KERNEL_OK")
</pallas_src>

<mosaic_0001>
module attributes {stable_mosaic.version = 11 : i64} {
  func.func @mlp_kernel(%arg0: i32, %arg1: memref<8x256xf32, #tpu.memory_space<vmem>>, %arg2: memref<256x128xbf16, #tpu.memory_space<vmem>>, %arg3: memref<1x128xf32, #tpu.memory_space<vmem>>, %arg4: memref<128x128xbf16, #tpu.memory_space<vmem>>, %arg5: memref<1x128xf32, #tpu.memory_space<vmem>>, %arg6: memref<8x2xf32, #tpu.memory_space<vmem>>) attributes {dimension_semantics = [#tpu.dimension_semantics<parallel>], iteration_bounds = array<i64: 1>, scalar_prefetch = 0 : i64, scratch_operands = 0 : i64, tpu.core_type = #tpu.core_type<tc>, window_params = [{transform_indices = @transform_0, window_bounds = array<i64: 8, 256>}, {pipeline_mode = #tpu.pipeline_mode<synchronous>, transform_indices = @transform_1, window_bounds = array<i64: 256, 128>}, {pipeline_mode = #tpu.pipeline_mode<synchronous>, transform_indices = @transform_2, window_bounds = array<i64: 1, 128>}, {pipeline_mode = #tpu.pipeline_mode<synchronous>, transform_indices = @transform_3, window_bounds = array<i64: 128, 128>}, {pipeline_mode = #tpu.pipeline_mode<synchronous>, transform_indices = @transform_4, window_bounds = array<i64: 1, 128>}, {transform_indices = @transform_5, window_bounds = array<i64: 8, 2>}]} {
    %c0 = arith.constant 0 : index
    %c0_0 = arith.constant 0 : index
    %0 = vector.load %arg1[%c0, %c0_0] : memref<8x256xf32, #tpu.memory_space<vmem>>, vector<8x256xf32>
    %1 = arith.truncf %0 : vector<8x256xf32> to vector<8x256xbf16>
    %c0_1 = arith.constant 0 : index
    %c0_2 = arith.constant 0 : index
    %2 = vector.load %arg2[%c0_1, %c0_2] : memref<256x128xbf16, #tpu.memory_space<vmem>>, vector<256x128xbf16>
    %cst = arith.constant dense<0.000000e+00> : vector<8x128xf32>
    %3 = tpu.matmul %1, %2, %cst {dimension_numbers = #tpu.dot_dimension_numbers<[1], [0], [0], [1], [0, 0, 1, 1], [], []>} : vector<8x256xbf16>, vector<256x128xbf16>, vector<8x128xf32> -> vector<8x128xf32>
    %c0_3 = arith.constant 0 : index
    %c0_4 = arith.constant 0 : index
    %4 = vector.load %arg3[%c0_3, %c0_4] : memref<1x128xf32, #tpu.memory_space<vmem>>, vector<1x128xf32>
    %5 = vector.broadcast %4 : vector<1x128xf32> to vector<8x128xf32>
    %6 = arith.addf %3, %5 : vector<8x128xf32>
    %cst_5 = arith.constant 0.000000e+00 : f32
    %7 = vector.broadcast %cst_5 : f32 to vector<8x128xf32>
    %8 = arith.maximumf %6, %7 : vector<8x128xf32>
    %9 = arith.truncf %8 : vector<8x128xf32> to vector<8x128xbf16>
    %c0_6 = arith.constant 0 : index
    %c0_7 = arith.constant 0 : index
    %10 = vector.load %arg4[%c0_6, %c0_7] : memref<128x128xbf16, #tpu.memory_space<vmem>>, vector<128x128xbf16>
    %cst_8 = arith.constant dense<0.000000e+00> : vector<8x128xf32>
    %11 = tpu.matmul %9, %10, %cst_8 {dimension_numbers = #tpu.dot_dimension_numbers<[1], [0], [0], [1], [0, 0, 1, 1], [], []>} : vector<8x128xbf16>, vector<128x128xbf16>, vector<8x128xf32> -> vector<8x128xf32>
    %c0_9 = arith.constant 0 : index
    %c0_10 = arith.constant 0 : index
    %12 = vector.load %arg5[%c0_9, %c0_10] : memref<1x128xf32, #tpu.memory_space<vmem>>, vector<1x128xf32>
    %13 = vector.broadcast %12 : vector<1x128xf32> to vector<8x128xf32>
    %14 = arith.addf %11, %13 : vector<8x128xf32>
    %15 = vector.extract_strided_slice %14 {offsets = [0, 0], sizes = [8, 2], strides = [1, 1]} : vector<8x128xf32> to vector<8x2xf32>
    %c0_11 = arith.constant 0 : index
    %c0_12 = arith.constant 0 : index
    %16 = vector.load %arg6[%c0_11, %c0_12] : memref<8x2xf32, #tpu.memory_space<vmem>>, vector<8x2xf32>
    tpu.vector_store %arg6[%c0_11, %c0_12], %15 {strides = array<i32>} : memref<8x2xf32, #tpu.memory_space<vmem>>, vector<8x2xf32>,
    return
  }
  func.func @transform_0(%arg0: i32) -> (i32, i32) {
    %c0_i32 = arith.constant 0 : i32
    %c0_i32_0 = arith.constant 0 : i32
    return %arg0, %c0_i32 : i32, i32
  }
  func.func @transform_1(%arg0: i32) -> (i32, i32) {
    %c0_i32 = arith.constant 0 : i32
    %c0_i32_0 = arith.constant 0 : i32
    %c0_i32_1 = arith.constant 0 : i32
    return %c0_i32, %c0_i32_0 : i32, i32
  }
  func.func @transform_2(%arg0: i32) -> (i32, i32) {
    %c0_i32 = arith.constant 0 : i32
    %c0_i32_0 = arith.constant 0 : i32
    %c0_i32_1 = arith.constant 0 : i32
    return %c0_i32, %c0_i32_0 : i32, i32
  }
  func.func @transform_3(%arg0: i32) -> (i32, i32) {
    %c0_i32 = arith.constant 0 : i32
    %c0_i32_0 = arith.constant 0 : i32
    %c0_i32_1 = arith.constant 0 : i32
    return %c0_i32, %c0_i32_0 : i32, i32
  }
  func.func @transform_4(%arg0: i32) -> (i32, i32) {
    %c0_i32 = arith.constant 0 : i32
    %c0_i32_0 = arith.constant 0 : i32
    %c0_i32_1 = arith.constant 0 : i32
    return %c0_i32, %c0_i32_0 : i32, i32
  }
  func.func @transform_5(%arg0: i32) -> (i32, i32) {
    %c0_i32 = arith.constant 0 : i32
    %c0_i32_0 = arith.constant 0 : i32
    return %arg0, %c0_i32 : i32, i32
  }
}

</mosaic_0001>

<llo_original>
// kernel: tpu_custom_call.1
$region0: #{tpu_custom_call.1}
  #allocation0 [shape = 'u32[]', space=smem, size = 0x4, offset = 0x4, fixed_abs, tag = 'smem constant byte address 0x4 - core index']
  #allocation1 [shape = 'u32[144,128]{1,0:T(1,128)}', space=vmem, size = 0x12000, scoped, tag = 'internal scratch']
  %s0 = inlined_call_operand.hbm [shape: f32[8,256], index: 0, kind: input, shape index: {}]
  %s1 = inlined_call_operand.hbm [shape: bf16[256,128], index: 1, kind: input, shape index: {}]
  %s2 = inlined_call_operand.vmem [shape: f32[1,128], index: 2, kind: input, shape index: {}]
  %s3 = inlined_call_operand.hbm [shape: bf16[128,128], index: 3, kind: input, shape index: {}]
  %s4 = inlined_call_operand.vmem [shape: f32[1,128], index: 4, kind: input, shape index: {}]
  %s5 = inlined_call_operand.vmem [shape: f32[8,2], index: 5, kind: output, shape index: {}]
  %s6 = sld [smem:[#allocation0]]
  $region42: #{tpu_custom_call.1} parent=0
    _
  %s8 = ssub.s32 1, %s6
  %s9 = scalar_select 0, %s8, %s6
  $region1: #{tpu_custom_call.1} parent=0
    #allocation2 [shape = 'u8[8192]{0}', space=vmem, size = 0x2000, scoped, tag = 'input window, operand 0, single buffered']
    #allocation3 [shape = 's32[1]{0}', space=sflag, size = 0x4, scoped, tag = 'scoped memory for tpu_custom_call.1']
    #allocation4 [shape = 'u8[65536]{0}', space=vmem, size = 0x10000, scoped, tag = 'input window, operand 1, single buffered']
    #allocation5 [shape = 's32[1]{0}', space=sflag, size = 0x4, scoped, tag = 'scoped memory for tpu_custom_call.1']
    #allocation6 [shape = 'u8[32768]{0}', space=vmem, size = 0x8000, scoped, tag = 'input window, operand 3, single buffered']
    %10 = vsyncpa [#allocation3], 0
    %11 = vsyncpa [#allocation5], 0
    // Predicated region
    $region2: #{tpu_custom_call.1} parent=1 // pred_check
      _
    $region3: #{tpu_custom_call.1} parent=1 // pred_check_branch
      %13 = sbr.rel (0) target = $region5
    $region4: #{tpu_custom_call.1} parent=1 // pred_region
      %s15 = ssub.s32 256, 256
      %16 = vsyncadd [#allocation3], %s15
      %s18 = sshll.u32 [#allocation2], 4
      %s19 = int_to_ptr.vmem [resolvable:$true] %s18
      %21 = dma.hbm_to_vmem [thread:$0]  %s0, 256, %s19, [#allocation3]
    $region5: #{tpu_custom_call.1} parent=1 // pred_fallthru
      _
    // Predicated region
    $region6: #{tpu_custom_call.1} parent=1 // pred_check
      _
    $region7: #{tpu_custom_call.1} parent=1 // pred_check_branch
      %23 = sbr.rel (0) target = $region9
    $region8: #{tpu_custom_call.1} parent=1 // pred_region
      %s25 = ssub.s32 2048, 2048
      %26 = vsyncadd [#allocation5], %s25
      %s27 = sshll.u32 [#allocation4], 4
      %s28 = int_to_ptr.vmem [resolvable:$true] %s27
      %33 = dma.hbm_to_vmem [thread:$0]  %s1, 2048, %s28, [#allocation5], 64, 64, 4
    $region9: #{tpu_custom_call.1} parent=1 // pred_fallthru
      _
    // Predicated region
    $region10: #{tpu_custom_call.1} parent=1 // pred_check
      _
    $region11: #{tpu_custom_call.1} parent=1 // pred_check_branch
      %35 = sbr.rel (0) target = $region13
    $region12: #{tpu_custom_call.1} parent=1 // pred_region
      _
    $region13: #{tpu_custom_call.1} parent=1 // pred_fallthru
      _
    // Predicated region
    $region14: #{tpu_custom_call.1} parent=1 // pred_check
      _
    $region15: #{tpu_custom_call.1} parent=1 // pred_check_branch
      %37 = sbr.rel (0) target = $region17
    $region16: #{tpu_custom_call.1} parent=1 // pred_region
      %s39 = ssub.s32 1024, 1024
      %40 = vsyncadd [#allocation5], %s39
      %s41 = sshll.u32 [#allocation6], 4
      %s42 = int_to_ptr.vmem [resolvable:$true] %s41
      %47 = dma.hbm_to_vmem [thread:$0]  %s3, 1024, %s42, [#allocation5], 64, 64, 4
    $region17: #{tpu_custom_call.1} parent=1 // pred_fallthru
      _
    // Predicated region
    $region18: #{tpu_custom_call.1} parent=1 // pred_check
      _
    $region19: #{tpu_custom_call.1} parent=1 // pred_check_branch
      %49 = sbr.rel (0) target = $region21
    $region20: #{tpu_custom_call.1} parent=1 // pred_region
      _
    $region21: #{tpu_custom_call.1} parent=1 // pred_fallthru
      _
    // Predicated region
    $region22: #{tpu_custom_call.1} parent=1 // pred_check
      _
    $region23: #{tpu_custom_call.1} parent=1 // pred_check_branch
      %51 = sbr.rel (0) target = $region25
    $region24: #{tpu_custom_call.1} parent=1 // pred_region
      %52 = dma.done [#allocation3], 256
    $region25: #{tpu_custom_call.1} parent=1 // pred_fallthru
      _
    // Predicated region
    $region26: #{tpu_custom_call.1} parent=1 // pred_check
      _
    $region27: #{tpu_custom_call.1} parent=1 // pred_check_branch
      %54 = sbr.rel (0) target = $region29
    $region28: #{tpu_custom_call.1} parent=1 // pred_region
      %55 = dma.done [#allocation5], 2048
    $region29: #{tpu_custom_call.1} parent=1 // pred_fallthru
      _
    // Predicated region
    $region30: #{tpu_custom_call.1} parent=1 // pred_check
      _
    $region31: #{tpu_custom_call.1} parent=1 // pred_check_branch
      %57 = sbr.rel (0) target = $region33
    $region32: #{tpu_custom_call.1} parent=1 // pred_region
      %58 = dma.done [#allocation5], 1024
    $region33: #{tpu_custom_call.1} parent=1 // pred_fallthru
      _
    %v60 = vld [vmem:[#allocation2] sm:$0xff]
    %v61 = vld [vmem:[#allocation2 + $0x8] sm:$0xff]
    %v62 = vpack.c.bf16 %v60, %v60
    %v63 = vpack.c.bf16 %v61, %v61
    %v64 = vld [vmem:[#allocation4] sm:$0xf]
    %v65 = vld [vmem:[#allocation4 + $0x4] sm:$0xf]
    %v66 = vld [vmem:[#allocation4 + $0x8] sm:$0xf]
    %v67 = vld [vmem:[#allocation4 + $0xc] sm:$0xf]
    %v68 = vld [vmem:[#allocation4 + $0x10] sm:$0xf]
    %v69 = vld [vmem:[#allocation4 + $0x14] sm:$0xf]
    %v70 = vld [vmem:[#allocation4 + $0x18] sm:$0xf]
    %v71 = vld [vmem:[#allocation4 + $0x1c] sm:$0xf]
    %v72 = vld [vmem:[#allocation4 + $0x20] sm:$0xf]
    %v73 = vld [vmem:[#allocation4 + $0x24] sm:$0xf]
    %v74 = vld [vmem:[#allocation4 + $0x28] sm:$0xf]
    %v75 = vld [vmem:[#allocation4 + $0x2c] sm:$0xf]
    %v76 = vld [vmem:[#allocation4 + $0x30] sm:$0xf]
    %v77 = vld [vmem:[#allocation4 + $0x34] sm:$0xf]
    %v78 = vld [vmem:[#allocation4 + $0x38] sm:$0xf]
    %v79 = vld [vmem:[#allocation4 + $0x3c] sm:$0xf]
    %v80 = vld [vmem:[#allocation4 + $0x40] sm:$0xf]
    %v81 = vld [vmem:[#allocation4 + $0x44] sm:$0xf]
    %v82 = vld [vmem:[#allocation4 + $0x48] sm:$0xf]
    %v83 = vld [vmem:[#allocation4 + $0x4c] sm:$0xf]
    %v84 = vld [vmem:[#allocation4 + $0x50] sm:$0xf]
    %v85 = vld [vmem:[#allocation4 + $0x54] sm:$0xf]
    %v86 = vld [vmem:[#allocation4 + $0x58] sm:$0xf]
    %v87 = vld [vmem:[#allocation4 + $0x5c] sm:$0xf]
    %v88 = vld [vmem:[#allocation4 + $0x60] sm:$0xf]
    %v89 = vld [vmem:[#allocation4 + $0x64] sm:$0xf]
    %v90 = vld [vmem:[#allocation4 + $0x68] sm:$0xf]
    %v91 = vld [vmem:[#allocation4 + $0x6c] sm:$0xf]
    %v92 = vld [vmem:[#allocation4 + $0x70] sm:$0xf]
    %v93 = vld [vmem:[#allocation4 + $0x74] sm:$0xf]
    %v94 = vld [vmem:[#allocation4 + $0x78] sm:$0xf]
    %v95 = vld [vmem:[#allocation4 + $0x7c] sm:$0xf]
    %v96 = vld [vmem:[%s2] sm:$0x1]
    %v98 = vlaneseq
    %v99 = vshrl.u32 %v98, 7
    %v100 = vsub.s32 0, %v99
    %v101 = vrot.slane %v96, %v100
    %v135 = vunpack.c.l.b16 %v64
    %v136 = vunpack.c.l.b16 %v65
    %v137 = vunpack.c.l.b16 %v66
    %v138 = vunpack.c.l.b16 %v67
    %v139 = vunpack.c.l.b16 %v68
    %v140 = vunpack.c.l.b16 %v69
    %v141 = vunpack.c.l.b16 %v70
    %v142 = vunpack.c.l.b16 %v71
    %v143 = vunpack.c.l.b16 %v72
    %v144 = vunpack.c.l.b16 %v73
    %v145 = vunpack.c.l.b16 %v74
    %v146 = vunpack.c.l.b16 %v75
    %v147 = vunpack.c.l.b16 %v76
    %v148 = vunpack.c.l.b16 %v77
    %v149 = vunpack.c.l.b16 %v78
    %v150 = vunpack.c.l.b16 %v79
    %v151 = vunpack.c.l.b16 %v80
    %v152 = vunpack.c.l.b16 %v81
    %v153 = vunpack.c.l.b16 %v82
    %v154 = vunpack.c.l.b16 %v83
    %v155 = vunpack.c.l.b16 %v84
    %v156 = vunpack.c.l.b16 %v85
    %v157 = vunpack.c.l.b16 %v86
    %v158 = vunpack.c.l.b16 %v87
    %v159 = vunpack.c.l.b16 %v88
    %v160 = vunpack.c.l.b16 %v89
    %v161 = vunpack.c.l.b16 %v90
    %v162 = vunpack.c.l.b16 %v91
    %v163 = vunpack.c.l.b16 %v92
    %v164 = vunpack.c.l.b16 %v93
    %v165 = vunpack.c.l.b16 %v94
    %v166 = vunpack.c.l.b16 %v95
    %v167 = vpack.c.b16 %v136, %v135
    %v168 = vpack.c.b16 %v138, %v137
    %v169 = vpack.c.b16 %v140, %v139
    %v170 = vpack.c.b16 %v142, %v141
    %v171 = vpack.c.b16 %v144, %v143
    %v172 = vpack.c.b16 %v146, %v145
    %v173 = vpack.c.b16 %v148, %v147
    %v174 = vpack.c.b16 %v150, %v149
    %v175 = vpack.c.b16 %v152, %v151
    %v176 = vpack.c.b16 %v154, %v153
    %v177 = vpack.c.b16 %v156, %v155
    %v178 = vpack.c.b16 %v158, %v157
    %v179 = vpack.c.b16 %v160, %v159
    %v180 = vpack.c.b16 %v162, %v161
    %v181 = vpack.c.b16 %v164, %v163
    %v182 = vpack.c.b16 %v166, %v165
    %199 = vmatprep.subr.bf16.mxu0 0
    %200 = vmatpush1.bf16.msra.mxu0 %v167
    %201 = vmatprep.subr.bf16.mxu0 0
    %202 = vmatpush1.bf16.msra.mxu0 %v168
    %203 = vmatprep.subr.bf16.mxu0 0
    %204 = vmatpush1.bf16.msra.mxu0 %v169
    %205 = vmatprep.subr.bf16.mxu0 0
    %206 = vmatpush1.bf16.msra.mxu0 %v170
    %207 = vmatprep.subr.bf16.mxu0 0
    %208 = vmatpush1.bf16.msra.mxu0 %v171
    %209 = vmatprep.subr.bf16.mxu0 0
    %210 = vmatpush1.bf16.msra.mxu0 %v172
    %211 = vmatprep.subr.bf16.mxu0 0
    %212 = vmatpush1.bf16.msra.mxu0 %v173
    %213 = vmatprep.subr.bf16.mxu0 0
    %214 = vmatpush1.bf16.msra.mxu0 %v174
    %215 = vmatprep.subr.bf16.mxu0 0
    %216 = vmatpush1.bf16.msra.mxu0 %v175
    %217 = vmatprep.subr.bf16.mxu0 0
    %218 = vmatpush1.bf16.msra.mxu0 %v176
    %219 = vmatprep.subr.bf16.mxu0 0
    %220 = vmatpush1.bf16.msra.mxu0 %v177
    %221 = vmatprep.subr.bf16.mxu0 0
    %222 = vmatpush1.bf16.msra.mxu0 %v178
    %223 = vmatprep.subr.bf16.mxu0 0
    %224 = vmatpush1.bf16.msra.mxu0 %v179
    %225 = vmatprep.subr.bf16.mxu0 0
    %226 = vmatpush1.bf16.msra.mxu0 %v180
    %227 = vmatprep.subr.bf16.mxu0 0
    %228 = vmatpush1.bf16.msra.mxu0 %v181
    %229 = vmatprep.subr.bf16.mxu0 0
    %230 = vmatpush1.bf16.msra.mxu0 %v182
    %231 = vmatprep.mubr.bf16.mxu0 %v63
    %232 = vmatmul.mubr.bf16.gmra.mrb[0].mxu0 %v62
    %v233 = vpop.f32.mrb[0].mxu0
    %v234 = vadd.f32 %v101, %v233
    %v235 = vpop.f32.mrb[0].mxu0
    %v236 = vpop.f32.mrb[0].mxu0
    %v237 = vpop.f32.mrb[0].mxu0
    %238 = vdwg.mxu0
    %v239 = vmax.f32 %v234, 0.0
    %v240 = vpack.c.bf16 %v239, %v239
    %v241 = vld [vmem:[#allocation6] sm:$0xf]
    %v242 = vld [vmem:[#allocation6 + $0x4] sm:$0xf]
    %v243 = vld [vmem:[#allocation6 + $0x8] sm:$0xf]
    %v244 = vld [vmem:[#allocation6 + $0xc] sm:$0xf]
    %v245 = vld [vmem:[#allocation6 + $0x10] sm:$0xf]
    %v246 = vld [vmem:[#allocation6 + $0x14] sm:$0xf]
    %v247 = vld [vmem:[#allocation6 + $0x18] sm:$0xf]
    %v248 = vld [vmem:[#allocation6 + $0x1c] sm:$0xf]
    %v249 = vld [vmem:[#allocation6 + $0x20] sm:$0xf]
    %v250 = vld [vmem:[#allocation6 + $0x24] sm:$0xf]
    %v251 = vld [vmem:[#allocation6 + $0x28] sm:$0xf]
    %v252 = vld [vmem:[#allocation6 + $0x2c] sm:$0xf]
    %v253 = vld [vmem:[#allocation6 + $0x30] sm:$0xf]
    %v254 = vld [vmem:[#allocation6 + $0x34] sm:$0xf]
    %v255 = vld [vmem:[#allocation6 + $0x38] sm:$0xf]
    %v256 = vld [vmem:[#allocation6 + $0x3c] sm:$0xf]
    %v257 = vld [vmem:[%s4] sm:$0x1]
    %v259 = vlaneseq
    %v260 = vshrl.u32 %v259, 7
    %v261 = vsub.s32 0, %v260
    %v262 = vrot.slane %v257, %v261
    %v280 = vunpack.c.l.b16 %v241
    %v281 = vunpack.c.l.b16 %v242
    %v282 = vunpack.c.l.b16 %v243
    %v283 = vunpack.c.l.b16 %v244
    %v284 = vunpack.c.l.b16 %v245
    %v285 = vunpack.c.l.b16 %v246
    %v286 = vunpack.c.l.b16 %v247
    %v287 = vunpack.c.l.b16 %v248
    %v288 = vunpack.c.l.b16 %v249
    %v289 = vunpack.c.l.b16 %v250
    %v290 = vunpack.c.l.b16 %v251
    %v291 = vunpack.c.l.b16 %v252
    %v292 = vunpack.c.l.b16 %v253
    %v293 = vunpack.c.l.b16 %v254
    %v294 = vunpack.c.l.b16 %v255
    %v295 = vunpack.c.l.b16 %v256
    %v296 = vpack.c.b16 %v281, %v280
    %v297 = vpack.c.b16 %v283, %v282
    %v298 = vpack.c.b16 %v285, %v284
    %v299 = vpack.c.b16 %v287, %v286
    %v300 = vpack.c.b16 %v289, %v288
    %v301 = vpack.c.b16 %v291, %v290
    %v302 = vpack.c.b16 %v293, %v292
    %v303 = vpack.c.b16 %v295, %v294
    %312 = vmatprep.subr.bf16.mxu0 0
    %313 = vmatpush1.bf16.msra.mxu0 %v296
    %314 = vmatprep.subr.bf16.mxu0 0
    %315 = vmatpush1.bf16.msra.mxu0 %v297
    %316 = vmatprep.subr.bf16.mxu0 0
    %317 = vmatpush1.bf16.msra.mxu0 %v298
    %318 = vmatprep.subr.bf16.mxu0 0
    %319 = vmatpush1.bf16.msra.mxu0 %v299
    %320 = vmatprep.subr.bf16.mxu0 0
    %321 = vmatpush1.bf16.msra.mxu0 %v300
    %322 = vmatprep.subr.bf16.mxu0 0
    %323 = vmatpush1.bf16.msra.mxu0 %v301
    %324 = vmatprep.subr.bf16.mxu0 0
    %325 = vmatpush1.bf16.msra.mxu0 %v302
    %326 = vmatprep.subr.bf16.mxu0 0
    %327 = vmatpush1.bf16.msra.mxu0 %v303
    %328 = vmatprep.subr.bf16.mxu0 0
    %329 = vmatpush1.bf16.msra.mxu0 0
    %330 = vmatprep.subr.bf16.mxu0 0
    %331 = vmatpush1.bf16.msra.mxu0 0
    %332 = vmatprep.subr.bf16.mxu0 0
    %333 = vmatpush1.bf16.msra.mxu0 0
    %334 = vmatprep.subr.bf16.mxu0 0
    %335 = vmatpush1.bf16.msra.mxu0 0
    %336 = vmatprep.subr.bf16.mxu0 0
    %337 = vmatpush1.bf16.msra.mxu0 0
    %338 = vmatprep.subr.bf16.mxu0 0
    %339 = vmatpush1.bf16.msra.mxu0 0
    %340 = vmatprep.subr.bf16.mxu0 0
    %341 = vmatpush1.bf16.msra.mxu0 0
    %342 = vmatprep.subr.bf16.mxu0 0
    %343 = vmatpush1.bf16.msra.mxu0 0
    %344 = vmatprep.mubr.bf16.mxu0 0
    %345 = vmatmul.mubr.bf16.gmra.mrb[0].mxu0 %v240
    %v346 = vpop.f32.mrb[0].mxu0
    %v347 = vadd.f32 %v262, %v346
    %v348 = vpop.f32.mrb[0].mxu0
    %v349 = vpop.f32.mrb[0].mxu0
    %v350 = vpop.f32.mrb[0].mxu0
    %351 = vdwg.mxu0
    %vm352 = vcmask 15360
    %353 = vst.msk [vmem:[%s5] sm:$0xff] %vm352, %v347
    // Predicated region
    $region34: #{tpu_custom_call.1} parent=1 // pred_check
      _
    $region35: #{tpu_custom_call.1} parent=1 // pred_check_branch
      %355 = sbr.rel (0) target = $region37
    $region36: #{tpu_custom_call.1} parent=1 // pred_region
      _
    $region37: #{tpu_custom_call.1} parent=1 // pred_fallthru
      _
    // Predicated region
    $region38: #{tpu_custom_call.1} parent=1 // pred_check
      _
    $region39: #{tpu_custom_call.1} parent=1 // pred_check_branch
      %357 = sbr.rel (0) target = $region41
    $region40: #{tpu_custom_call.1} parent=1 // pred_region
      _
    $region41: #{tpu_custom_call.1} parent=1 // pred_fallthru
      _
    %358 = vsyncpa [#allocation3], 1
    %359 = vsyncpa [#allocation5], 1

</llo_original>
